<compile_context>
chip_gen: v7x
topology: tpu7x:2x2x1
jax: 0.10.0
libtpu: 0.0.40
codegen_flags: <defaults>
</compile_context>

<pallas_src>
import functools

import jax
import jax.numpy as jnp
from jax.experimental import pallas as pl
from jax.experimental.pallas import tpu as pltpu

_LANES = 128
_SUBLANES = 8


def _round_up(x, m):
    return -(-x // m) * m


def _vmem_limit_bytes():
    """Explicit scoped-VMEM limit: ~80% of the chip's physical VMEM."""
    try:
        info = pltpu.get_tpu_info()
        vmem = int(getattr(info, "vmem_capacity_bytes", 0)) or (64 << 20)
    except Exception:
        vmem = 64 << 20  # conservative fallback (v7x per-TC physical VMEM)
    return int(vmem * 0.8)


def _pick_tile_n(n, d, itemsize, vmem_limit):
    """Largest row tile whose pipeline footprint fits inside vmem_limit.

    Footprint per tile row (lane-padded feature width):
      3 inputs x 2 pipeline buffers in the input dtype
      + ~5 live f32 temporaries inside the kernel (casts / diffs / squares).
    """
    d_pad = _round_up(d, _LANES)
    per_row = d_pad * (3 * 2 * itemsize + 5 * 4)
    budget = max(1 << 20, vmem_limit - (4 << 20))  # headroom for outputs / misc
    t = max(1, budget // per_row)
    align = 16 if itemsize == 2 else 8
    n_pad = _round_up(n, align)
    if t >= n_pad:
        return n_pad                      # whole problem in one tile
    if t >= 512:
        return (t // 512) * 512           # keep big tiles a multiple of 128 (lane-dense)
    return max(align, (t // align) * align)


def _partial_to_block(partial, block_shape):
    """Place a scalar partial sum at [0, 0] of a lane-dense block, zeros elsewhere."""
    r = jax.lax.broadcasted_iota(jnp.int32, block_shape, 0)
    c = jax.lax.broadcasted_iota(jnp.int32, block_shape, 1)
    return jnp.where((r == 0) & (c == 0), partial, 0.0)


def _lane_shape(tile_n):
    """Lane-dense 2-D shape holding tile_n per-row values."""
    if tile_n % _LANES == 0:
        return (tile_n // _LANES, _LANES)
    return (1, tile_n)


def _row_mask(shape, tile_n, n_rows):
    """Boolean mask over the lane-dense per-row layout: True for real rows."""
    r = jax.lax.broadcasted_iota(jnp.int32, shape, 0)
    c = jax.lax.broadcasted_iota(jnp.int32, shape, 1)
    global_row = pl.program_id(0) * tile_n + r * shape[1] + c
    return global_row < n_rows


def _soft_margin_kernel(n_rows, a_ref, p_ref, n_ref, o_ref):
    tile_n = a_ref.shape[0]
    shape = _lane_shape(tile_n)
    a = a_ref[...].astype(jnp.float32)
    p = p_ref[...].astype(jnp.float32)
    n = n_ref[...].astype(jnp.float32)
    # Per-row squared L2 distances, moved onto a lane-dense layout so the
    # sqrt/exp/log1p chain runs on dense vregs (EUP relief for small D).
    sq_ap = jnp.sum((a - p) ** 2, axis=1).reshape(shape)
    sq_an = jnp.sum((a - n) ** 2, axis=1).reshape(shape)
    valid = _row_mask(shape, tile_n, n_rows)
    # Zero padded rows BEFORE the transcendental chain (no garbage into sqrt/exp).
    sq_ap = jnp.where(valid, sq_ap, 0.0)
    sq_an = jnp.where(valid, sq_an, 0.0)
    x = jnp.sqrt(sq_an) - jnp.sqrt(sq_ap)                        # target y = 1
    # Numerically stable softplus(-x) = log(1 + exp(-x)); no overflow for x << 0.
    sp = jnp.maximum(-x, 0.0) + jnp.log1p(jnp.exp(-jnp.abs(x)))
    sp = jnp.where(valid, sp, 0.0)                               # drop padded rows
    o_ref[...] = _partial_to_block(jnp.sum(sp), o_ref.shape)


def _triplet_margin_kernel(n_rows, margin, a_ref, p_ref, n_ref, o_ref):
    eps = 1e-6  # PyTorch pairwise_distance default eps
    tile_n = a_ref.shape[0]
    shape = _lane_shape(tile_n)
    a = a_ref[...].astype(jnp.float32)
    p = p_ref[...].astype(jnp.float32)
    n = n_ref[...].astype(jnp.float32)
    sq_ap = jnp.sum((a - p + eps) ** 2, axis=1).reshape(shape)
    sq_an = jnp.sum((a - n + eps) ** 2, axis=1).reshape(shape)
    valid = _row_mask(shape, tile_n, n_rows)
    sq_ap = jnp.where(valid, sq_ap, 0.0)
    sq_an = jnp.where(valid, sq_an, 0.0)
    hinge = jnp.maximum(jnp.sqrt(sq_ap) - jnp.sqrt(sq_an) + margin, 0.0)
    hinge = jnp.where(valid, hinge, 0.0)                         # drop padded rows
    o_ref[...] = _partial_to_block(jnp.sum(hinge), o_ref.shape)


def triplet_loss(anchor, pos, neg, margin=None, tile_n=None):
    """Pallas implementation of Tripletloss.forward. Returns a scalar f32 loss.

    Tip: feed bf16 embeddings to halve the dominant HBM traffic; all norm /
    softplus math is done in f32 inside the kernel regardless of input dtype.
    """
    assert anchor.shape == pos.shape == neg.shape and anchor.ndim == 2
    N, D = anchor.shape
    itemsize = jnp.dtype(anchor.dtype).itemsize
    vmem_limit = _vmem_limit_bytes()
    align = 16 if itemsize == 2 else 8
    if tile_n is None:
        tile_n = _pick_tile_n(N, D, itemsize, vmem_limit)
    tile_n = max(align, (tile_n // align) * align)
    num_tiles = pl.cdiv(N, tile_n)

    if margin is None:
        kernel = functools.partial(_soft_margin_kernel, N)
        transcendentals = 4 * N            # 2 sqrt + exp + log1p per row
    else:
        kernel = functools.partial(_triplet_margin_kernel, N, float(margin))
        transcendentals = 2 * N            # 2 sqrt per row

    out_bytes = num_tiles * _SUBLANES * _LANES * 4
    cost = pl.CostEstimate(
        flops=6 * N * D,
        transcendentals=transcendentals,
        bytes_accessed=3 * N * D * itemsize + out_bytes,
    )

    partials = pl.pallas_call(
        kernel,
        grid=(num_tiles,),
        in_specs=[
            pl.BlockSpec((tile_n, D), lambda i: (i, 0)),
            pl.BlockSpec((tile_n, D), lambda i: (i, 0)),
            pl.BlockSpec((tile_n, D), lambda i: (i, 0)),
        ],
        # One lane-dense (8, 128) block of partial sums per grid step -> unmasked
        # stores, and the grid axis can be sharded across v7x's two TensorCores.
        out_specs=pl.BlockSpec((_SUBLANES, _LANES), lambda i: (i, 0)),
        out_shape=jax.ShapeDtypeStruct((num_tiles * _SUBLANES, _LANES), jnp.float32),
        compiler_params=pltpu.CompilerParams(
            dimension_semantics=("parallel",),
            vmem_limit_bytes=vmem_limit),
        cost_estimate=cost,
    )(anchor, pos, neg)

    # Tiny epilogue: global mean over real rows (padded rows were zeroed in-kernel).
    return jnp.sum(partials) / N


def _reference(anchor, pos, neg, margin=None):
    # Pure-JAX reference for a sanity check (same f32-after-cast math as the kernel).
    a = anchor.astype(jnp.float32)
    p = pos.astype(jnp.float32)
    n = neg.astype(jnp.float32)
    if margin is None:
        ap = jnp.linalg.norm(a - p, axis=1)
        an = jnp.linalg.norm(a - n, axis=1)
        return jnp.mean(jax.nn.softplus(-(an - ap)))
    eps = 1e-6
    d_ap = jnp.linalg.norm(a - p + eps, axis=1)
    d_an = jnp.linalg.norm(a - n + eps, axis=1)
    return jnp.mean(jnp.maximum(d_ap - d_an + margin, 0.0))


if __name__ == "__main__":
    key = jax.random.PRNGKey(0)
    ka, kp, kn = jax.random.split(key, 3)
    N, D = 16, 32  # small embedding batch
    anchor = jax.random.normal(ka, (N, D), dtype=jnp.float32)
    pos = jax.random.normal(kp, (N, D), dtype=jnp.float32)
    neg = jax.random.normal(kn, (N, D), dtype=jnp.float32)

    # Branch 1: margin=None (SoftMarginLoss path, module default) — default tiling.
    loss_soft = triplet_loss(anchor, pos, neg, margin=None)
    jax.block_until_ready(loss_soft)

    # Branch 2: explicit margin (TripletMarginLoss path) — default tiling.
    loss_margin = triplet_loss(anchor, pos, neg, margin=0.3)
    jax.block_until_ready(loss_margin)

    # Exercise the multi-tile grid path explicitly (2 tiles of 8 rows each).
    loss_soft_t = triplet_loss(anchor, pos, neg, margin=None, tile_n=8)
    loss_margin_t = triplet_loss(anchor, pos, neg, margin=0.3, tile_n=8)
    jax.block_until_ready((loss_soft_t, loss_margin_t))

    # bf16 inputs (half the HBM traffic); kernel accumulates in f32.
    a_bf, p_bf, n_bf = (x.astype(jnp.bfloat16) for x in (anchor, pos, neg))
    loss_soft_bf = triplet_loss(a_bf, p_bf, n_bf, margin=None)
    loss_margin_bf = triplet_loss(a_bf, p_bf, n_bf, margin=0.3)
    jax.block_until_ready((loss_soft_bf, loss_margin_bf))

    ref_soft = _reference(anchor, pos, neg, margin=None)
    ref_margin = _reference(anchor, pos, neg, margin=0.3)
    ref_soft_bf = _reference(a_bf, p_bf, n_bf, margin=None)
    ref_margin_bf = _reference(a_bf, p_bf, n_bf, margin=0.3)

    assert jnp.allclose(loss_soft, ref_soft, atol=1e-5, rtol=1e-5)
    assert jnp.allclose(loss_margin, ref_margin, atol=1e-5, rtol=1e-5)
    assert jnp.allclose(loss_soft_t, ref_soft, atol=1e-5, rtol=1e-5)
    assert jnp.allclose(loss_margin_t, ref_margin, atol=1e-5, rtol=1e-5)
    assert jnp.allclose(loss_soft_bf, ref_soft_bf, atol=1e-4, rtol=1e-4)
    assert jnp.allclose(loss_margin_bf, ref_margin_bf, atol=1e-4, rtol=1e-4)

    print("KERNEL_OK")
</pallas_src>

<mosaic_0001>
module attributes {stable_mosaic.version = 11 : i64} {
  func.func @_soft_margin_kernel(%arg0: i32, %arg1: memref<16x32xf32, #tpu.memory_space<vmem>>, %arg2: memref<16x32xf32, #tpu.memory_space<vmem>>, %arg3: memref<16x32xf32, #tpu.memory_space<vmem>>, %arg4: memref<8x128xf32, #tpu.memory_space<vmem>>) attributes {dimension_semantics = [#tpu.dimension_semantics<parallel>], iteration_bounds = array<i64: 1>, scalar_prefetch = 0 : i64, scratch_operands = 0 : i64, tpu.core_type = #tpu.core_type<tc>, window_params = [{transform_indices = @transform_0, window_bounds = array<i64: 16, 32>}, {transform_indices = @transform_1, window_bounds = array<i64: 16, 32>}, {transform_indices = @transform_2, window_bounds = array<i64: 16, 32>}, {transform_indices = @transform_3, window_bounds = array<i64: 8, 128>}]} {
    %c0 = arith.constant 0 : index
    %c0_0 = arith.constant 0 : index
    %0 = vector.load %arg1[%c0, %c0_0] : memref<16x32xf32, #tpu.memory_space<vmem>>, vector<16x32xf32>
    %c0_1 = arith.constant 0 : index
    %c0_2 = arith.constant 0 : index
    %1 = vector.load %arg2[%c0_1, %c0_2] : memref<16x32xf32, #tpu.memory_space<vmem>>, vector<16x32xf32>
    %c0_3 = arith.constant 0 : index
    %c0_4 = arith.constant 0 : index
    %2 = vector.load %arg3[%c0_3, %c0_4] : memref<16x32xf32, #tpu.memory_space<vmem>>, vector<16x32xf32>
    %3 = arith.subf %0, %1 : vector<16x32xf32>
    %4 = arith.mulf %3, %3 : vector<16x32xf32>
    %cst = arith.constant dense<0.000000e+00> : vector<16xf32>
    %5 = vector.multi_reduction <add>, %4, %cst [1] : vector<16x32xf32> to vector<16xf32>
    %6 = vector.shape_cast %5 : vector<16xf32> to vector<1x16xf32>
    %7 = arith.subf %0, %2 : vector<16x32xf32>
    %8 = arith.mulf %7, %7 : vector<16x32xf32>
    %cst_5 = arith.constant dense<0.000000e+00> : vector<16xf32>
    %9 = vector.multi_reduction <add>, %8, %cst_5 [1] : vector<16x32xf32> to vector<16xf32>
    %10 = vector.shape_cast %9 : vector<16xf32> to vector<1x16xf32>
    %11 = tpu.iota {dimensions = array<i32: 0>} : vector<1x16xi32>
    %12 = tpu.iota {dimensions = array<i32: 1>} : vector<1x16xi32>
    %c16_i32 = arith.constant 16 : i32
    %13 = arith.muli %arg0, %c16_i32 : i32
    %c16_i32_6 = arith.constant 16 : i32
    %14 = vector.broadcast %c16_i32_6 : i32 to vector<1x16xi32>
    %15 = arith.muli %11, %14 : vector<1x16xi32>
    %16 = vector.broadcast %13 : i32 to vector<1x16xi32>
    %17 = arith.addi %16, %15 : vector<1x16xi32>
    %18 = arith.addi %17, %12 : vector<1x16xi32>
    %c16_i32_7 = arith.constant 16 : i32
    %19 = vector.broadcast %c16_i32_7 : i32 to vector<1x16xi32>
    %20 = arith.cmpi slt, %18, %19 : vector<1x16xi32>
    %cst_8 = arith.constant 0.000000e+00 : f32
    %21 = vector.broadcast %cst_8 : f32 to vector<1x16xf32>
    %22 = arith.select %20, %6, %21 : vector<1x16xi1>, vector<1x16xf32>
    %cst_9 = arith.constant 0.000000e+00 : f32
    %23 = vector.broadcast %cst_9 : f32 to vector<1x16xf32>
    %24 = arith.select %20, %10, %23 : vector<1x16xi1>, vector<1x16xf32>
    %25 = math.sqrt %24 : vector<1x16xf32>
    %26 = math.sqrt %22 : vector<1x16xf32>
    %27 = arith.subf %25, %26 : vector<1x16xf32>
    %cst_10 = arith.constant 0.000000e+00 : f32
    %28 = vector.broadcast %cst_10 : f32 to vector<1x16xf32>
    %29 = arith.subf %28, %27 : vector<1x16xf32>
    %cst_11 = arith.constant 0.000000e+00 : f32
    %30 = vector.broadcast %cst_11 : f32 to vector<1x16xf32>
    %31 = arith.maximumf %29, %30 : vector<1x16xf32>
    %32 = math.absf %27 : vector<1x16xf32>
    %cst_12 = arith.constant 0.000000e+00 : f32
    %33 = vector.broadcast %cst_12 : f32 to vector<1x16xf32>
    %34 = arith.subf %33, %32 : vector<1x16xf32>
    %35 = math.exp %34 : vector<1x16xf32>
    %36 = math.log1p %35 : vector<1x16xf32>
    %37 = arith.addf %31, %36 : vector<1x16xf32>
    %cst_13 = arith.constant 0.000000e+00 : f32
    %38 = vector.broadcast %cst_13 : f32 to vector<1x16xf32>
    %39 = arith.select %20, %37, %38 : vector<1x16xi1>, vector<1x16xf32>
    %40 = vector.shape_cast %39 : vector<1x16xf32> to vector<1x1x16xf32>
    %cst_14 = arith.constant dense<0.000000e+00> : vector<1xf32>
    %41 = vector.multi_reduction <add>, %40, %cst_14 [1, 2] : vector<1x1x16xf32> to vector<1xf32>
    %42 = vector.shape_cast %41 : vector<1xf32> to vector<1x1x1xf32>
    %43 = vector.extract %42[0, 0, 0] : f32 from vector<1x1x1xf32>
    %44 = tpu.iota {dimensions = array<i32: 0>} : vector<8x128xi32>
    %45 = tpu.iota {dimensions = array<i32: 1>} : vector<8x128xi32>
    %c0_i32 = arith.constant 0 : i32
    %46 = vector.broadcast %c0_i32 : i32 to vector<8x128xi32>
    %47 = arith.cmpi eq, %44, %46 : vector<8x128xi32>
    %c0_i32_15 = arith.constant 0 : i32
    %48 = vector.broadcast %c0_i32_15 : i32 to vector<8x128xi32>
    %49 = arith.cmpi eq, %45, %48 : vector<8x128xi32>
    %50 = arith.andi %47, %49 : vector<8x128xi1>
    %cst_16 = arith.constant 0.000000e+00 : f32
    %51 = vector.broadcast %43 : f32 to vector<8x128xf32>
    %52 = vector.broadcast %cst_16 : f32 to vector<8x128xf32>
    %53 = arith.select %50, %51, %52 : vector<8x128xi1>, vector<8x128xf32>
    %c0_17 = arith.constant 0 : index
    %c0_18 = arith.constant 0 : index
    %54 = vector.load %arg4[%c0_17, %c0_18] : memref<8x128xf32, #tpu.memory_space<vmem>>, vector<8x128xf32>
    tpu.vector_store %arg4[%c0_17, %c0_18], %53 {strides = array<i32>} : memref<8x128xf32, #tpu.memory_space<vmem>>, vector<8x128xf32>,
    return
  }
  func.func @transform_0(%arg0: i32) -> (i32, i32) {
    %c0_i32 = arith.constant 0 : i32
    %c0_i32_0 = arith.constant 0 : i32
    return %arg0, %c0_i32 : i32, i32
  }
  func.func @transform_1(%arg0: i32) -> (i32, i32) {
    %c0_i32 = arith.constant 0 : i32
    %c0_i32_0 = arith.constant 0 : i32
    return %arg0, %c0_i32 : i32, i32
  }
  func.func @transform_2(%arg0: i32) -> (i32, i32) {
    %c0_i32 = arith.constant 0 : i32
    %c0_i32_0 = arith.constant 0 : i32
    return %arg0, %c0_i32 : i32, i32
  }
  func.func @transform_3(%arg0: i32) -> (i32, i32) {
    %c0_i32 = arith.constant 0 : i32
    %c0_i32_0 = arith.constant 0 : i32
    return %arg0, %c0_i32 : i32, i32
  }
}

</mosaic_0001>

<llo_original>
// kernel: tpu_custom_call.1
$region0: #{tpu_custom_call.1}
  #allocation0 [shape = 'u32[]', space=smem, size = 0x4, offset = 0x4, fixed_abs, tag = 'smem constant byte address 0x4 - core index']
  #allocation1 [shape = 'u32[144,128]{1,0:T(1,128)}', space=vmem, size = 0x12000, scoped, tag = 'internal scratch']
  %s0 = inlined_call_operand.hbm [shape: f32[16,32], index: 0, kind: input, shape index: {}]
  %s1 = inlined_call_operand.hbm [shape: f32[16,32], index: 1, kind: input, shape index: {}]
  %s2 = inlined_call_operand.hbm [shape: f32[16,32], index: 2, kind: input, shape index: {}]
  %s3 = inlined_call_operand.hbm [shape: f32[8,128], index: 3, kind: output, shape index: {}]
  %s4 = sld [smem:[#allocation0]]
  $region34: #{tpu_custom_call.1} parent=0
    _
  %s6 = ssub.s32 1, %s4
  %s7 = scalar_select 0, %s6, %s4
  $region1: #{tpu_custom_call.1} parent=0
    #allocation2 [shape = 'u8[8192]{0}', space=vmem, size = 0x2000, scoped, tag = 'input window, operand 0, single buffered']
    #allocation3 [shape = 's32[1]{0}', space=sflag, size = 0x4, scoped, tag = 'scoped memory for tpu_custom_call.1']
    #allocation4 [shape = 's32[1]{0}', space=sflag, size = 0x4, scoped, tag = 'scoped memory for tpu_custom_call.1']
    #allocation5 [shape = 'u8[8192]{0}', space=vmem, size = 0x2000, scoped, tag = 'input window, operand 1, single buffered']
    #allocation6 [shape = 's32[1]{0}', space=sflag, size = 0x4, scoped, tag = 'scoped memory for tpu_custom_call.1']
    #allocation7 [shape = 'u8[8192]{0}', space=vmem, size = 0x2000, scoped, tag = 'input window, operand 2, single buffered']
    #allocation8 [shape = 'u8[4096]{0}', space=vmem, size = 0x1000, scoped, tag = 'output window, operand 0, single buffered']
    %8 = vsyncpa [#allocation3], 0
    %9 = vsyncpa [#allocation6], 0
    %10 = vsyncpa [#allocation4], 0
    // Predicated region
    $region2: #{tpu_custom_call.1} parent=1 // pred_check
      _
    $region3: #{tpu_custom_call.1} parent=1 // pred_check_branch
      %12 = sbr.rel (0) target = $region5
    $region4: #{tpu_custom_call.1} parent=1 // pred_region
      %s14 = ssub.s32 256, 256
      %15 = vsyncadd [#allocation3], %s14
      %s16 = sshll.u32 [#allocation2], 4
      %s17 = int_to_ptr.vmem [resolvable:$true] %s16
      %22 = dma.hbm_to_vmem [thread:$0]  %s0, 256, %s17, [#allocation3], 128, 128, 8
    $region5: #{tpu_custom_call.1} parent=1 // pred_fallthru
      _
    // Predicated region
    $region6: #{tpu_custom_call.1} parent=1 // pred_check
      _
    $region7: #{tpu_custom_call.1} parent=1 // pred_check_branch
      %24 = sbr.rel (0) target = $region9
    $region8: #{tpu_custom_call.1} parent=1 // pred_region
      %s26 = ssub.s32 256, 256
      %27 = vsyncadd [#allocation6], %s26
      %s28 = sshll.u32 [#allocation5], 4
      %s29 = int_to_ptr.vmem [resolvable:$true] %s28
      %34 = dma.hbm_to_vmem [thread:$0]  %s1, 256, %s29, [#allocation6], 128, 128, 8
    $region9: #{tpu_custom_call.1} parent=1 // pred_fallthru
      _
    // Predicated region
    $region10: #{tpu_custom_call.1} parent=1 // pred_check
      _
    $region11: #{tpu_custom_call.1} parent=1 // pred_check_branch
      %36 = sbr.rel (0) target = $region13
    $region12: #{tpu_custom_call.1} parent=1 // pred_region
      %s38 = ssub.s32 256, 256
      %39 = vsyncadd [#allocation6], %s38
      %s40 = sshll.u32 [#allocation7], 4
      %s41 = int_to_ptr.vmem [resolvable:$true] %s40
      %46 = dma.hbm_to_vmem [thread:$0]  %s2, 256, %s41, [#allocation6], 128, 128, 8
    $region13: #{tpu_custom_call.1} parent=1 // pred_fallthru
      _
    // Predicated region
    $region14: #{tpu_custom_call.1} parent=1 // pred_check
      _
    $region15: #{tpu_custom_call.1} parent=1 // pred_check_branch
      %48 = sbr.rel (0) target = $region17
    $region16: #{tpu_custom_call.1} parent=1 // pred_region
      %49 = dma.done [#allocation3], 256
    $region17: #{tpu_custom_call.1} parent=1 // pred_fallthru
      _
    // Predicated region
    $region18: #{tpu_custom_call.1} parent=1 // pred_check
      _
    $region19: #{tpu_custom_call.1} parent=1 // pred_check_branch
      %51 = sbr.rel (0) target = $region21
    $region20: #{tpu_custom_call.1} parent=1 // pred_region
      %52 = dma.done [#allocation6], 256
    $region21: #{tpu_custom_call.1} parent=1 // pred_fallthru
      _
    // Predicated region
    $region22: #{tpu_custom_call.1} parent=1 // pred_check
      _
    $region23: #{tpu_custom_call.1} parent=1 // pred_check_branch
      %54 = sbr.rel (0) target = $region25
    $region24: #{tpu_custom_call.1} parent=1 // pred_region
      %55 = dma.done [#allocation6], 256
    $region25: #{tpu_custom_call.1} parent=1 // pred_fallthru
      _
    %v56 = vld [vmem:[#allocation2] sm:$0xff]
    %v57 = vld [vmem:[#allocation2 + $0x8] sm:$0xff]
    %v58 = vld [vmem:[#allocation5] sm:$0xff]
    %v59 = vld [vmem:[#allocation5 + $0x8] sm:$0xff]
    %v60 = vld [vmem:[#allocation7] sm:$0xff]
    %v61 = vld [vmem:[#allocation7 + $0x8] sm:$0xff]
    %v62 = vsub.f32 %v56, %v58
    %v63 = vsub.f32 %v57, %v59
    %v64 = vmul.f32 %v62, %v62
    %v65 = vmul.f32 %v63, %v63
    %vm66 = vcmask 261120
    %v67 = vsel %vm66, %v64, 0.0
    %68 = vadd.xlane.f32.xlu0 %v67
    %v69 = vpop.xlane.xlu0 %68
    %v70 = vsel %vm66, %v65, 0.0
    %71 = vadd.xlane.f32.xlu0 %v70
    %v72 = vpop.xlane.xlu0 %71
    %v73 = vsub.f32 %v56, %v60
    %v74 = vsub.f32 %v57, %v61
    %v75 = vmul.f32 %v73, %v73
    %v76 = vmul.f32 %v74, %v74
    %v77 = vsel %vm66, %v75, 0.0
    %78 = vadd.xlane.f32.xlu0 %v77
    %v79 = vpop.xlane.xlu0 %78
    %v80 = vsel %vm66, %v76, 0.0
    %81 = vadd.xlane.f32.xlu0 %v80
    %v82 = vpop.xlane.xlu0 %81
    %v83 = vlaneseq
    %v84 = vshrl.u32 %v83, 7
    %v85 = vlaneseq
    %v86 = vand.u32 %v85, 127
    %s87 = smul.u32 0, 16
    %v88 = vmul.u32 %v84, 16
    %v89 = vstv %s87
    %v90 = vadd.s32 %v89, %v88
    %v91 = vadd.s32 %v90, %v86
    %vm92 = vcmp.lt.s32.totalorder %v91, 16
    %v95 = vlaneseq
    %v96 = vshrl.u32 %v95, 7
    %v97 = vsub.s32 %v86, %v96
    %v98 = vrot.slane %v69, %v97
    %v99 = vadd.s32 %v86, 4294967288
    %v100 = vlaneseq
    %v101 = vshrl.u32 %v100, 7
    %v102 = vsub.s32 %v99, %v101
    %v103 = vrot.slane %v72, %v102
    %vm104 = vcmask 130112
    %v105 = vsel %vm104, %v103, %v98
    %v107 = vsel %vm92, %v105, 0.0
    %v110 = vlaneseq
    %v111 = vshrl.u32 %v110, 7
    %v112 = vsub.s32 %v86, %v111
    %v113 = vrot.slane %v79, %v112
    %v114 = vlaneseq
    %v115 = vshrl.u32 %v114, 7
    %v116 = vsub.s32 %v99, %v115
    %v117 = vrot.slane %v82, %v116
    %v118 = vsel %vm104, %v117, %v113
    %v120 = vsel %vm92, %v118, 0.0
    %v121 = vrsqrt.pop %v120
    %v122 = vmul.f32 %v120, %v121
    %vm123 = vcmp.eq.f32.partialorder %v120, inf
    %v124 = vsel %vm123, %v120, %v122
    %vm125 = vcmp.eq.f32.partialorder %v120, 0.0
    %v126 = vand.u32 %v120, 2147483648
    %v127 = vsel %vm125, %v126, %v124
    %v128 = vrsqrt.pop %v107
    %v129 = vmul.f32 %v107, %v128
    %vm130 = vcmp.eq.f32.partialorder %v107, inf
    %v131 = vsel %vm130, %v107, %v129
    %vm132 = vcmp.eq.f32.partialorder %v107, 0.0
    %v133 = vand.u32 %v107, 2147483648
    %v134 = vsel %vm132, %v133, %v131
    %v135 = vsub.f32 %v127, %v134
    %v136 = vsub.f32 0.0, %v135
    %v137 = vmax.f32 %v136, 0.0
    %v138 = vand.u32 2147483647, %v135
    %v139 = vsub.f32 0.0, %v138
    %v140 = vmul.f32 %v139, 1.442695
    %v141 = vpow.pop %v140
    %v142 = vadd.f32 %v141, 1.0
    %v143 = vlog2.pop %v142
    %v144 = vmul.f32 %v143, 0.6931472
    %v145 = vmul.f32 -0.5, %v141
    %v146 = vadd.f32 %v145, 1.0
    %v147 = vmul.f32 %v146, %v141
    %v148 = vand.u32 2147483647, %v141
    %vm149 = vcmp.lt.f32.partialorder %v148, 0.0004427343
    %v150 = vsel %vm149, %v147, %v144
    %v151 = vadd.f32 %v137, %v150
    %v152 = vsel %vm92, %v151, 0.0
    %vm153 = vcmask 122880
    %v154 = vsel %vm153, %v152, 0.0
    %155 = vadd.xlane.f32.xlu0 %v154
    %v156 = vpop.xlane.xlu0 %155
    %v157 = vrot.slane %v156, 4
    %v158 = vadd.f32 %v156, %v157
    %v159 = vrot.slane %v158, 2
    %v160 = vadd.f32 %v158, %v159
    %v161 = vrot.slane %v160, 1
    %v162 = vadd.f32 %v160, %v161
    %s163 = vtos %v162
    %vm164 = vcmp.eq.s32.totalorder %v84, 0
    %vm165 = vcmp.eq.s32.totalorder %v86, 0
    %vm166 = vmand %vm164, %vm165
    %v167 = vstv %s163
    %v168 = vsel %vm166, %v167, 0.0
    %169 = vst [vmem:[#allocation8] sm:$0xff] %v168
    // Predicated region
    $region26: #{tpu_custom_call.1} parent=1 // pred_check
      _
    $region27: #{tpu_custom_call.1} parent=1 // pred_check_branch
      %171 = sbr.rel (0) target = $region29
    $region28: #{tpu_custom_call.1} parent=1 // pred_region
      %s173 = ssub.s32 128, 128
      %174 = vsyncadd [#allocation4], %s173
      %s176 = sshll.u32 [#allocation8], 4
      %s177 = int_to_ptr.vmem [resolvable:$true] %s176
      %179 = dma.vmem_to_hbm [thread:$0]  %s177, 128, %s3, [#allocation4]
    $region29: #{tpu_custom_call.1} parent=1 // pred_fallthru
      _
    // Predicated region
    $region30: #{tpu_custom_call.1} parent=1 // pred_check
      _
    $region31: #{tpu_custom_call.1} parent=1 // pred_check_branch
      %181 = sbr.rel (0) target = $region33
    $region32: #{tpu_custom_call.1} parent=1 // pred_region
      %182 = dma.done [#allocation4], 128
    $region33: #{tpu_custom_call.1} parent=1 // pred_fallthru
      _
    %183 = vsyncpa [#allocation3], 1
    %184 = vsyncpa [#allocation6], 1
    %185 = vsyncpa [#allocation4], 1

</llo_original>
